<compile_context>
chip_gen: v5e
topology: v5e:2x2
jax: 0.10.0
libtpu: 0.0.40
codegen_flags: <defaults>
</compile_context>

<pallas_src>
import functools

import jax
import jax.numpy as jnp
from jax import lax
from jax.experimental import pallas as pl
from jax.experimental.pallas import tpu as pltpu

LEN_KEEP_BY_STAGE = {1: 162, 2: 54, 3: 18, 4: 6}

# Per-kernel tile budget for the score stage (input + output, double-buffered).
# Chosen to leave headroom inside v7x's 64 MiB physical VMEM and the 16/32 MiB
# default scoped limits on v5e / v6e+v7x.
_SCORE_VMEM_BUDGET = 24 << 20


# --------------------------------------------------------------------------- #
# Stage 1: per-row score (mean over feature dim)
# --------------------------------------------------------------------------- #
def _score_kernel(x_ref, score_ref, *, inv_d):
    # x_ref: (TB, TL, D) VMEM, score_ref: (TB, TL) f32 VMEM.
    # sum * (1/D): one scalar multiply instead of a per-element divide. The
    # accumulation dtype is forced to f32 so bf16 inputs are upcast per-vreg
    # inside the reduce (no full f32 copy of the tile materialized first).
    score_ref[...] = jnp.sum(x_ref[...], axis=-1, dtype=jnp.float32) * inv_d


def _pick_score_tiles(B, L, D, itemsize, budget=_SCORE_VMEM_BUDGET):
    """VMEM-budgeted (tb, TL) tiles for the score kernel."""
    # Batch tile: the full batch, or 8 when B is sublane-aligned past that.
    # Both keep the (tb, TL) score output block layout-legal ((8,128) rule) and
    # its stores sublane-dense.
    tb = B if (B <= 8 or B % 8 != 0) else 8

    def fits(tl):
        return 2 * tb * tl * (D * itemsize + 4) <= budget  # 2x = double-buffered

    tl = L
    if not fits(tl) and L % 128 == 0:
        # Prefer tiling L in lane-aligned chunks over shrinking tb below 8: the
        # D-reduction stays inside one block (no cross-step accumulator) and the
        # (tb, TL) stores stay unmasked.
        tl = 128
        for cand in range(L - 128, 128, -128):
            if L % cand == 0 and fits(cand):
                tl = cand
                break
    # v7x megacore: expose >= 2 parallel grid steps when the batch axis
    # collapses to a single block (harmless on single-core v5e/v6e).
    if B // tb == 1 and L % 256 == 0:
        tl = min(tl, L // 2)
    return tb, tl


def _scores(x):
    B, L, D = x.shape
    itemsize = jnp.dtype(x.dtype).itemsize
    tb, tl = _pick_score_tiles(B, L, D, itemsize)
    footprint = 2 * tb * tl * (D * itemsize + 4)
    # Explicit scoped-VMEM limit: above the 16 MiB (v5e) / 32 MiB (v6e, v7x)
    # defaults so the chosen tiles stay fully double-buffered.
    vmem_limit = int(max(footprint + (8 << 20), 40 << 20))
    return pl.pallas_call(
        functools.partial(_score_kernel, inv_d=1.0 / D),
        out_shape=jax.ShapeDtypeStruct((B, L), jnp.float32),
        grid_spec=pltpu.PrefetchScalarGridSpec(
            num_scalar_prefetch=0,
            grid=(B // tb, L // tl),
            in_specs=[pl.BlockSpec((tb, tl, D), lambda b, l: (b, l, 0))],
            out_specs=pl.BlockSpec((tb, tl), lambda b, l: (b, l)),
        ),
        compiler_params=pltpu.CompilerParams(
            dimension_semantics=("parallel", "parallel"),
            vmem_limit_bytes=vmem_limit),
    )(x)


# --------------------------------------------------------------------------- #
# Stage 3a: index-driven DMA row gather (len_keep << L)
# --------------------------------------------------------------------------- #
def _gather_dma_kernel(idx_ref, row_ref, tok_ref, out_ref):
    # idx_ref: (B, len_keep) int32 SMEM (scalar prefetch; consumed by the
    #          row BlockSpec's index_map — unused in the body).
    # row_ref: (1, D) VMEM  = x[b, idx[b, k], :]   (pl.Element row window)
    # tok_ref: (1, 1, D) VMEM (same block for every k -> fetched once per b)
    # out_ref: (1, len_keep + 1, D) VMEM, resident across the k grid axis.
    del idx_ref
    k = pl.program_id(1)

    @pl.when(k == 0)
    def _():
        out_ref[0, pl.ds(0, 1), :] = tok_ref[0]          # class token, row 0

    out_ref[0, pl.ds(k + 1, 1), :] = row_ref[...]        # exact copy of x row


def _gather_rows_dma(x, token, inx, len_keep):
    """Reads only B*len_keep rows of x from HBM (vs. a full second read of x)."""
    B, L, D = x.shape
    token3 = token.reshape(B, 1, D)
    out_shape = jax.ShapeDtypeStruct((B, len_keep + 1, D), x.dtype)

    def build(row_buffers):
        row_kwargs = {} if row_buffers is None else dict(
            pipeline_mode=pl.Buffered(row_buffers))
        return pl.pallas_call(
            _gather_dma_kernel,
            out_shape=out_shape,
            grid_spec=pltpu.PrefetchScalarGridSpec(
                # inx lives in SMEM and drives x's Element index_map: no padded
                # (len_keep, 1) VMEM index tile, no extra per-step DMA.
                num_scalar_prefetch=1,
                grid=(B, len_keep),
                in_specs=[
                    pl.BlockSpec((pl.Squeezed(), pl.Element(1), D),
                                 lambda b, k, idx: (b, idx[b, k], 0),
                                 **row_kwargs),
                    pl.BlockSpec((1, 1, D), lambda b, k, idx: (b, 0, 0)),
                ],
                out_specs=pl.BlockSpec((1, len_keep + 1, D),
                                       lambda b, k, idx: (b, 0, 0)),
            ),
            compiler_params=pltpu.CompilerParams(
                # k revisits the same output block -> "arbitrary"; b is
                # independent -> "parallel" (v7x megacore sharding).
                dimension_semantics=("parallel", "arbitrary")),
        )(inx, x, token3)

    try:
        # Per-row (1, D) copies are latency- (not bandwidth-) limited: 4-deep
        # buffering keeps several row DMAs in flight per grid step.
        return build(4)
    except Exception:  # pragma: no cover — conservative fallback to default 2-deep
        return build(None)


# --------------------------------------------------------------------------- #
# Stage 3b: dense one-hot MXU gather (len_keep covers most of L, e.g. stage 1)
# --------------------------------------------------------------------------- #
def _gather_matmul_kernel(x_ref, tok_ref, idx_ref, out_ref, *, len_keep):
    # out[k+1, :] = x[idx[k], :] via (len_keep, L) @ (L, D) on the MXU.
    # Precision.HIGHEST keeps the 0/1 selection exact for f32 inputs; the
    # (len_keep+1, D) result (token as row 0) is assembled in registers and
    # written with ONE aligned full-tile store.
    L = x_ref.shape[1]
    idx_col = idx_ref[0]                                           # (len_keep, 1)
    lane_ids = lax.broadcasted_iota(jnp.int32, (len_keep, L), 1)
    onehot = (lane_ids == idx_col).astype(x_ref.dtype)             # exact 0/1
    gathered = jnp.dot(onehot, x_ref[0],
                       preferred_element_type=jnp.float32,
                       precision=lax.Precision.HIGHEST)            # (len_keep, D)
    full = jnp.concatenate(
        [tok_ref[0].astype(out_ref.dtype), gathered.astype(out_ref.dtype)], axis=0)
    out_ref[...] = full[None]


def _gather_rows_matmul(x, token, inx, len_keep):
    B, L, D = x.shape
    token3 = token.reshape(B, 1, D)
    idx3 = inx.reshape(B, len_keep, 1)
    itemsize = jnp.dtype(x.dtype).itemsize
    vmem_limit = int(max(
        32 << 20,
        2 * (L * D * itemsize + (len_keep + 2) * D * 4) + (4 << 20)))
    return pl.pallas_call(
        functools.partial(_gather_matmul_kernel, len_keep=len_keep),
        out_shape=jax.ShapeDtypeStruct((B, len_keep + 1, D), x.dtype),
        grid_spec=pltpu.PrefetchScalarGridSpec(
            num_scalar_prefetch=0,
            grid=(B,),
            in_specs=[
                pl.BlockSpec((1, L, D), lambda b: (b, 0, 0)),
                pl.BlockSpec((1, 1, D), lambda b: (b, 0, 0)),
                pl.BlockSpec((1, len_keep, 1), lambda b: (b, 0, 0)),
            ],
            out_specs=pl.BlockSpec((1, len_keep + 1, D), lambda b: (b, 0, 0)),
        ),
        compiler_params=pltpu.CompilerParams(
            dimension_semantics=("parallel",),
            vmem_limit_bytes=vmem_limit),
    )(x, token3, idx3)


# --------------------------------------------------------------------------- #
# Module-equivalent wrapper
# --------------------------------------------------------------------------- #
def patch_selection(x, token, stage=3, *, gather_impl="auto"):
    """Equivalent of PatchSelection.forward(x, token) -> (x_new, inx)."""
    len_keep = LEN_KEEP_BY_STAGE.get(stage, 6)
    B, L, D = x.shape
    assert token.shape == (B, D)
    assert len_keep <= L

    scores = _scores(x)                        # (B, L) f32

    # TODO(synk): descending sort / top-k has no clean Pallas TPU equivalent;
    # lax.top_k is used as glue (tie-breaking can differ from torch.argsort
    # only for exactly-equal scores).
    _, inx = lax.top_k(scores, len_keep)       # (B, len_keep) int32, descending

    if gather_impl == "auto":
        # DMA row gather when len_keep << L (stages 2-4); dense one-hot MXU
        # gather when the kept rows cover most of x anyway (stage 1).
        gather_impl = "matmul" if 2 * len_keep >= L else "dma"
    if gather_impl == "dma":
        x_new = _gather_rows_dma(x, token, inx, len_keep)
    else:
        x_new = _gather_rows_matmul(x, token, inx, len_keep)
    return x_new, inx


def _reference(x, token, len_keep):
    scores = x.astype(jnp.float32).mean(axis=-1)
    inds = jnp.argsort(-scores, axis=1)        # descending
    inx = inds[:, :len_keep]
    x_new = jnp.take_along_axis(x, inx[..., None], axis=1)
    x_new = jnp.concatenate([token[:, None, :], x_new], axis=1)
    return x_new, inx


if __name__ == "__main__":
    B, L, D = 2, 64, 128
    stage = 3                                  # len_keep = 18
    len_keep = LEN_KEEP_BY_STAGE[stage]

    key = jax.random.PRNGKey(0)
    kx, kt = jax.random.split(key)
    x = jax.random.normal(kx, (B, L, D), dtype=jnp.float32)
    token = jax.random.normal(kt, (B, D), dtype=jnp.float32)

    x_new_ref, inx_ref = _reference(x, token, len_keep)

    # Default (auto) path: index-driven DMA row gather (len_keep << L).
    x_new, inx = patch_selection(x, token, stage=stage)
    jax.block_until_ready((x_new, inx))
    assert x_new.shape == (B, len_keep + 1, D)
    assert jnp.array_equal(inx, inx_ref.astype(inx.dtype)), "index mismatch (dma)"
    assert jnp.array_equal(x_new, x_new_ref), "gather mismatch (dma)"

    # Dense one-hot MXU path (auto-selected for stage 1); exercised explicitly
    # here for coverage of both gather implementations.
    x_new_mm, inx_mm = patch_selection(x, token, stage=stage, gather_impl="matmul")
    jax.block_until_ready((x_new_mm, inx_mm))
    assert jnp.array_equal(inx_mm, inx_ref.astype(inx_mm.dtype)), "index mismatch (matmul)"
    assert jnp.allclose(x_new_mm, x_new_ref, atol=1e-6, rtol=1e-6), "gather mismatch (matmul)"

    print("KERNEL_OK")
</pallas_src>

<mosaic_0001>
module attributes {stable_mosaic.version = 11 : i64} {
  func.func @_score_kernel(%arg0: i32, %arg1: i32, %arg2: memref<2x64x128xf32, #tpu.memory_space<vmem>>, %arg3: memref<2x64xf32, #tpu.memory_space<vmem>>) attributes {dimension_semantics = [#tpu.dimension_semantics<parallel>, #tpu.dimension_semantics<parallel>], iteration_bounds = array<i64: 1, 1>, scalar_prefetch = 0 : i64, scratch_operands = 0 : i64, tpu.core_type = #tpu.core_type<tc>, window_params = [{transform_indices = @transform_0, window_bounds = array<i64: 2, 64, 128>}, {transform_indices = @transform_1, window_bounds = array<i64: 2, 64>}]} {
    %c0 = arith.constant 0 : index
    %c0_0 = arith.constant 0 : index
    %c0_1 = arith.constant 0 : index
    %0 = vector.load %arg2[%c0, %c0_0, %c0_1] : memref<2x64x128xf32, #tpu.memory_space<vmem>>, vector<2x64x128xf32>
    %cst = arith.constant dense<0.000000e+00> : vector<2x64xf32>
    %1 = vector.multi_reduction <add>, %0, %cst [2] : vector<2x64x128xf32> to vector<2x64xf32>
    %cst_2 = arith.constant 7.812500e-03 : f32
    %2 = vector.broadcast %cst_2 : f32 to vector<2x64xf32>
    %3 = arith.mulf %1, %2 : vector<2x64xf32>
    %c0_3 = arith.constant 0 : index
    %c0_4 = arith.constant 0 : index
    %4 = vector.load %arg3[%c0_3, %c0_4] : memref<2x64xf32, #tpu.memory_space<vmem>>, vector<2x64xf32>
    tpu.vector_store %arg3[%c0_3, %c0_4], %3 {strides = array<i32>} : memref<2x64xf32, #tpu.memory_space<vmem>>, vector<2x64xf32>,
    return
  }
  func.func @transform_0(%arg0: i32, %arg1: i32) -> (i32, i32, i32) {
    %c0_i32 = arith.constant 0 : i32
    %c0_i32_0 = arith.constant 0 : i32
    return %arg0, %arg1, %c0_i32 : i32, i32, i32
  }
  func.func @transform_1(%arg0: i32, %arg1: i32) -> (i32, i32) {
    %c0_i32 = arith.constant 0 : i32
    return %arg0, %arg1 : i32, i32
  }
}

</mosaic_0001>

<llo_original>
// kernel: tpu_custom_call.1
$region0: #{tpu_custom_call.1}
  #allocation0 [shape = 'u32[]', space=smem, size = 0x4, offset = 0x4, fixed_abs, tag = 'smem constant byte address 0x4 - core index']
  #allocation1 [shape = 'u32[72,128]{1,0:T(1,128)}', space=vmem, size = 0x9000, scoped, tag = 'internal scratch']
  %s0 = inlined_call_operand.hbm [shape: f32[2,64,128], index: 0, kind: input, shape index: {}]
  %s1 = inlined_call_operand.hbm [shape: f32[2,64], index: 1, kind: output, shape index: {}]
  %s2 = sld [smem:[#allocation0]]
  $region18: #{tpu_custom_call.1} parent=0
    _
  %s4 = ssub.s32 1, %s2
  %s5 = scalar_select 0, %s4, %s2
  $region1: #{tpu_custom_call.1} parent=0
    #allocation2 [shape = 'u8[65536]{0}', space=vmem, size = 0x10000, scoped, tag = 'input window, operand 0, single buffered']
    #allocation3 [shape = 's32[1]{0}', space=sflag, size = 0x4, scoped, tag = 'scoped memory for tpu_custom_call.1']
    #allocation4 [shape = 's32[1]{0}', space=sflag, size = 0x4, scoped, tag = 'scoped memory for tpu_custom_call.1']
    #allocation5 [shape = 'u8[1024]{0}', space=vmem, size = 0x400, scoped, tag = 'output window, operand 0, single buffered']
    %6 = vsyncpa [#allocation3], 0
    %7 = vsyncpa [#allocation4], 0
    // Predicated region
    $region2: #{tpu_custom_call.1} parent=1 // pred_check
      _
    $region3: #{tpu_custom_call.1} parent=1 // pred_check_branch
      %9 = sbr.rel (0) target = $region5
    $region4: #{tpu_custom_call.1} parent=1 // pred_region
      %11 = vsyncadd [#allocation3], 0
      %s12 = sshll.u32 %s0, 4
      %s13 = int_to_ptr.hbm [resolvable:$true] %s12
      %s14 = sshll.u32 [#allocation2], 4
      %s15 = int_to_ptr.vmem [resolvable:$true] %s14
      %20 = dma.hbm_to_vmem [thread:$0]  %s13, 2048, %s15, [#allocation3], 128, 128, 8
    $region5: #{tpu_custom_call.1} parent=1 // pred_fallthru
      _
    // Predicated region
    $region6: #{tpu_custom_call.1} parent=1 // pred_check
      _
    $region7: #{tpu_custom_call.1} parent=1 // pred_check_branch
      %22 = sbr.rel (0) target = $region9
    $region8: #{tpu_custom_call.1} parent=1 // pred_region
      %24 = dma.done [#allocation3], 2048
    $region9: #{tpu_custom_call.1} parent=1 // pred_fallthru
      _
    %v25 = vld [vmem:[#allocation2] sm:$0xff]
    %v26 = vld [vmem:[#allocation2 + $0x8] sm:$0xff]
    %v27 = vld [vmem:[#allocation2 + $0x10] sm:$0xff]
    %v28 = vld [vmem:[#allocation2 + $0x18] sm:$0xff]
    %v29 = vld [vmem:[#allocation2 + $0x20] sm:$0xff]
    %v30 = vld [vmem:[#allocation2 + $0x28] sm:$0xff]
    %v31 = vld [vmem:[#allocation2 + $0x30] sm:$0xff]
    %v32 = vld [vmem:[#allocation2 + $0x38] sm:$0xff]
    %v33 = vld [vmem:[#allocation2 + $0x40] sm:$0xff]
    %v34 = vld [vmem:[#allocation2 + $0x48] sm:$0xff]
    %v35 = vld [vmem:[#allocation2 + $0x50] sm:$0xff]
    %v36 = vld [vmem:[#allocation2 + $0x58] sm:$0xff]
    %v37 = vld [vmem:[#allocation2 + $0x60] sm:$0xff]
    %v38 = vld [vmem:[#allocation2 + $0x68] sm:$0xff]
    %v39 = vld [vmem:[#allocation2 + $0x70] sm:$0xff]
    %v40 = vld [vmem:[#allocation2 + $0x78] sm:$0xff]
    %41 = vadd.xlane.f32.xlu0 %v25
    %v42 = vpop.xlane.xlu0 %41
    %43 = vadd.xlane.f32.xlu0 %v26
    %v44 = vpop.xlane.xlu0 %43
    %45 = vadd.xlane.f32.xlu0 %v27
    %v46 = vpop.xlane.xlu0 %45
    %47 = vadd.xlane.f32.xlu0 %v28
    %v48 = vpop.xlane.xlu0 %47
    %49 = vadd.xlane.f32.xlu0 %v29
    %v50 = vpop.xlane.xlu0 %49
    %51 = vadd.xlane.f32.xlu0 %v30
    %v52 = vpop.xlane.xlu0 %51
    %53 = vadd.xlane.f32.xlu0 %v31
    %v54 = vpop.xlane.xlu0 %53
    %55 = vadd.xlane.f32.xlu0 %v32
    %v56 = vpop.xlane.xlu0 %55
    %57 = vadd.xlane.f32.xlu0 %v33
    %v58 = vpop.xlane.xlu0 %57
    %59 = vadd.xlane.f32.xlu0 %v34
    %v60 = vpop.xlane.xlu0 %59
    %61 = vadd.xlane.f32.xlu0 %v35
    %v62 = vpop.xlane.xlu0 %61
    %63 = vadd.xlane.f32.xlu0 %v36
    %v64 = vpop.xlane.xlu0 %63
    %65 = vadd.xlane.f32.xlu0 %v37
    %v66 = vpop.xlane.xlu0 %65
    %67 = vadd.xlane.f32.xlu0 %v38
    %v68 = vpop.xlane.xlu0 %67
    %69 = vadd.xlane.f32.xlu0 %v39
    %v70 = vpop.xlane.xlu0 %69
    %71 = vadd.xlane.f32.xlu0 %v40
    %v72 = vpop.xlane.xlu0 %71
    %v73 = vmul.f32 %v42, 0.0078125
    %v74 = vmul.f32 %v44, 0.0078125
    %v75 = vmul.f32 %v46, 0.0078125
    %v76 = vmul.f32 %v48, 0.0078125
    %v77 = vmul.f32 %v50, 0.0078125
    %v78 = vmul.f32 %v52, 0.0078125
    %v79 = vmul.f32 %v54, 0.0078125
    %v80 = vmul.f32 %v56, 0.0078125
    %v81 = vmul.f32 %v58, 0.0078125
    %v82 = vmul.f32 %v60, 0.0078125
    %v83 = vmul.f32 %v62, 0.0078125
    %v84 = vmul.f32 %v64, 0.0078125
    %v85 = vmul.f32 %v66, 0.0078125
    %v86 = vmul.f32 %v68, 0.0078125
    %v87 = vmul.f32 %v70, 0.0078125
    %v88 = vmul.f32 %v72, 0.0078125
    %v105 = vlaneseq
    %v106 = vand.u32 %v105, 127
    %v107 = vperm.slane %v73, %v106
    %v108 = vadd.s32 %v106, 4294967288
    %v109 = vperm.slane %v74, %v108
    %vm110 = vcmask 130112
    %v111 = vsel %vm110, %v109, %v107
    %v112 = vadd.s32 %v106, 4294967280
    %v113 = vperm.slane %v75, %v112
    %vm114 = vcmask 195712
    %v115 = vsel %vm114, %v113, %v111
    %v116 = vadd.s32 %v106, 4294967272
    %v117 = vperm.slane %v76, %v116
    %vm118 = vcmask 261312
    %v119 = vsel %vm118, %v117, %v115
    %v120 = vadd.s32 %v106, 4294967264
    %v121 = vperm.slane %v77, %v120
    %vm122 = vcmask 326912
    %v123 = vsel %vm122, %v121, %v119
    %v124 = vadd.s32 %v106, 4294967256
    %v125 = vperm.slane %v78, %v124
    %vm126 = vcmask 392512
    %v127 = vsel %vm126, %v125, %v123
    %v128 = vadd.s32 %v106, 4294967248
    %v129 = vperm.slane %v79, %v128
    %vm130 = vcmask 458112
    %v131 = vsel %vm130, %v129, %v127
    %v132 = vadd.s32 %v106, 4294967240
    %v133 = vperm.slane %v80, %v132
    %vm134 = vcmask 523712
    %v135 = vsel %vm134, %v133, %v131
    %v136 = vperm.slane %v81, %v106
    %v137 = vperm.slane %v82, %v108
    %v138 = vsel %vm110, %v137, %v136
    %v139 = vperm.slane %v83, %v112
    %v140 = vsel %vm114, %v139, %v138
    %v141 = vperm.slane %v84, %v116
    %v142 = vsel %vm118, %v141, %v140
    %v143 = vperm.slane %v85, %v120
    %v144 = vsel %vm122, %v143, %v142
    %v145 = vperm.slane %v86, %v124
    %v146 = vsel %vm126, %v145, %v144
    %v147 = vperm.slane %v87, %v128
    %v148 = vsel %vm130, %v147, %v146
    %v149 = vperm.slane %v88, %v132
    %v150 = vsel %vm134, %v149, %v148
    %vm151 = vcmask 1041409
    %v152 = vsel %vm151, %v150, %v135
    %vm154 = vcmask 517120
    %155 = vst.msk [vmem:[#allocation5] sm:$0x3] %vm154, %v152
    // Predicated region
    $region10: #{tpu_custom_call.1} parent=1 // pred_check
      _
    $region11: #{tpu_custom_call.1} parent=1 // pred_check_branch
      %157 = sbr.rel (0) target = $region13
    $region12: #{tpu_custom_call.1} parent=1 // pred_region
      %159 = vsyncadd [#allocation4], 0
      %s161 = sshll.u32 [#allocation5], 4
      %s162 = int_to_ptr.vmem [resolvable:$true] %s161
      %s163 = sshll.u32 %s1, 4
      %s164 = int_to_ptr.hbm [resolvable:$true] %s163
      %166 = dma.vmem_to_hbm [thread:$0]  %s162, 32, %s164, [#allocation4]
    $region13: #{tpu_custom_call.1} parent=1 // pred_fallthru
      _
    // Predicated region
    $region14: #{tpu_custom_call.1} parent=1 // pred_check
      _
    $region15: #{tpu_custom_call.1} parent=1 // pred_check_branch
      %168 = sbr.rel (0) target = $region17
    $region16: #{tpu_custom_call.1} parent=1 // pred_region
      %170 = dma.done [#allocation4], 32
    $region17: #{tpu_custom_call.1} parent=1 // pred_fallthru
      _
    %171 = vsyncpa [#allocation3], 1
    %172 = vsyncpa [#allocation4], 1

</llo_original>
